<compile_context>
chip_gen: v7x
topology: tpu7x:2x2x1
jax: 0.10.0
libtpu: 0.0.40
codegen_flags: <defaults>
</compile_context>

<pallas_src>
import functools

import jax
import jax.numpy as jnp
from jax import lax
from jax.experimental import pallas as pl
from jax.experimental.pallas import tpu as pltpu


def _round_up(x, m):
    return (x + m - 1) // m * m


def _regression_block_kernel(x_ref, w1_ref, b1_ref, w2_ref, b2_ref,
                             w3_ref, b3_ref, w4_ref, b4_ref, o_ref,
                             *, final_relu):
    """Fused 4-layer MLP, computed with the batch on the lane dimension.

    x_ref : (bm, n_in)   current batch tile (natural PyTorch row layout)
    w1..w3: (out, in)    native nn.Linear layout, used as  W @ x^T
    b1..b3: (out, 1)     column-vector biases (broadcast over the lane/batch dim)
    w4    : (d3, 1)      final-layer weight as a column (VPU path, off the MXU)
    b4    : (1, 1)
    o_ref : (1, bm)      lane-dense output tile
    """
    x = x_ref[...]                      # keep input dtype; MXU accumulates f32

    # Layer 1: relu(W1 @ x^T + b1) -> (d1, bm).  NT matmul (contract last dims),
    # so x never needs an explicit transpose/relayout.
    nt_dims = (((1,), (1,)), ((), ()))
    h = lax.dot_general(w1_ref[...], x, nt_dims,
                        preferred_element_type=jnp.float32)
    h = jnp.maximum(h + b1_ref[...], 0.0)

    # Layer 2: (d2, d1) @ (d1, bm) -> (d2, bm)
    h = jnp.dot(w2_ref[...], h, preferred_element_type=jnp.float32)
    h = jnp.maximum(h + b2_ref[...], 0.0)

    # Layer 3: (d3, d2) @ (d2, bm) -> (d3, bm)
    h = jnp.dot(w3_ref[...], h, preferred_element_type=jnp.float32)
    h = jnp.maximum(h + b3_ref[...], 0.0)

    # Layer 4: a (1, d3) contraction is far too small for the MXU -> VPU
    # broadcast-multiply + cross-sublane reduce (XLU), result already (1, bm).
    y = jnp.sum(w4_ref[...] * h, axis=0, keepdims=True) + b4_ref[...]
    if final_relu:
        y = jnp.maximum(y, 0.0)

    o_ref[...] = y.astype(o_ref.dtype)


def prepare_params(params):
    """One-time layout prep (call once outside the hot path).

    Weights stay in native PyTorch (out, in) layout; biases become column
    vectors; the last-layer weight becomes a (d3, 1) column for the VPU path.
    """
    return dict(
        w1=params["w1"], b1=params["b1"].reshape(-1, 1),
        w2=params["w2"], b2=params["b2"].reshape(-1, 1),
        w3=params["w3"], b3=params["b3"].reshape(-1, 1),
        w4=params["w4"].reshape(-1, 1),
        b4=params["b4"].reshape(1, 1),
    )


@functools.partial(jax.jit, static_argnames=("activation", "block_m"))
def regression_block_forward(x, prepared, activation="relu", block_m=256):
    """x: (B, n_in) -> (B, 1), fused Pallas MLP tiled over the batch."""
    B, n_in = x.shape
    d1, d2, d3 = n_in // 2, n_in // 4, n_in // 8

    # Batch tile: multiple of 128 so the (1, bm) output block is lane-dense,
    # large enough to amortize per-grid-step overhead, but not bigger than the
    # (128-rounded) batch.  For wide n_in / huge block_m, re-derive against the
    # per-generation VMEM budget (v7x: 64 MiB physical / 32 MiB default scoped).
    bm = max(128, min(_round_up(block_m, 128), _round_up(B, 128)))
    B_pad = _round_up(B, bm)
    if B_pad != B:
        x = jnp.pad(x, ((0, B_pad - B), (0, 0)))

    kernel = functools.partial(_regression_block_kernel,
                               final_relu=(activation == "relu"))

    def resident(shape):
        # Weights/biases are tiny: keep them fully VMEM-resident across the grid.
        return pl.BlockSpec(shape, lambda i: tuple(0 for _ in shape))

    grid = (B_pad // bm,)
    out_t = pl.pallas_call(
        kernel,
        out_shape=jax.ShapeDtypeStruct((1, B_pad), x.dtype),
        grid_spec=pltpu.PrefetchScalarGridSpec(
            num_scalar_prefetch=0,
            grid=grid,
            in_specs=[
                pl.BlockSpec((bm, n_in), lambda i: (i, 0)),   # x batch tile
                resident((d1, n_in)), resident((d1, 1)),
                resident((d2, d1)), resident((d2, 1)),
                resident((d3, d2)), resident((d3, 1)),
                resident((d3, 1)), resident((1, 1)),
            ],
            out_specs=pl.BlockSpec((1, bm), lambda i: (0, i)),  # lane-dense
        ),
        compiler_params=pltpu.CompilerParams(
            dimension_semantics=("parallel",)),
    )(x, prepared["w1"], prepared["b1"], prepared["w2"], prepared["b2"],
      prepared["w3"], prepared["b3"], prepared["w4"], prepared["b4"])

    # (1, B_pad) -> (B, 1): cheap wrapper-side layout plumbing.
    return out_t[0, :B].reshape(B, 1)


def _init_linear(key, fan_out, fan_in):
    """Deterministic PyTorch-style uniform init U(-1/sqrt(fan_in), 1/sqrt(fan_in))."""
    kw, kb = jax.random.split(key)
    bound = 1.0 / jnp.sqrt(jnp.float32(fan_in))
    w = jax.random.uniform(kw, (fan_out, fan_in), jnp.float32, -bound, bound)
    b = jax.random.uniform(kb, (fan_out,), jnp.float32, -bound, bound)
    return w, b


def _reference_forward(x, params, activation):
    h = jnp.maximum(x @ params["w1"].T + params["b1"], 0.0)
    h = jnp.maximum(h @ params["w2"].T + params["b2"], 0.0)
    h = jnp.maximum(h @ params["w3"].T + params["b3"], 0.0)
    y = h @ params["w4"].T + params["b4"]
    if activation == "relu":
        y = jnp.maximum(y, 0.0)
    return y


if __name__ == "__main__":
    key = jax.random.PRNGKey(0)
    n_in = 32            # hidden sizes: 32 -> 16 -> 8 -> 4 -> 1
    batch = 500          # deliberately NOT a multiple of the batch tile
    activation = "relu"

    kx, k1, k2, k3, k4 = jax.random.split(key, 5)
    x = jax.random.normal(kx, (batch, n_in), jnp.float32)

    w1, b1 = _init_linear(k1, n_in // 2, n_in)
    w2, b2 = _init_linear(k2, n_in // 4, n_in // 2)
    w3, b3 = _init_linear(k3, n_in // 8, n_in // 4)
    w4, b4 = _init_linear(k4, 1, n_in // 8)
    params = dict(w1=w1, b1=b1, w2=w2, b2=b2, w3=w3, b3=b3, w4=w4, b4=b4)

    prepared = prepare_params(params)           # one-time layout prep
    out = regression_block_forward(x, prepared, activation=activation,
                                   block_m=256)  # -> grid of 2 tiles
    out = jax.block_until_ready(out)

    ref = _reference_forward(x, params, activation)
    assert out.shape == (batch, 1)
    assert jnp.allclose(out, ref, atol=1e-4, rtol=1e-4), "mismatch vs reference"

    print("KERNEL_OK")
</pallas_src>

<mosaic_0001>
module attributes {stable_mosaic.version = 11 : i64} {
  func.func @_regression_block_kernel(%arg0: i32, %arg1: memref<256x32xf32, #tpu.memory_space<vmem>>, %arg2: memref<16x32xf32, #tpu.memory_space<vmem>>, %arg3: memref<16x1xf32, #tpu.memory_space<vmem>>, %arg4: memref<8x16xf32, #tpu.memory_space<vmem>>, %arg5: memref<8x1xf32, #tpu.memory_space<vmem>>, %arg6: memref<4x8xf32, #tpu.memory_space<vmem>>, %arg7: memref<4x1xf32, #tpu.memory_space<vmem>>, %arg8: memref<4x1xf32, #tpu.memory_space<vmem>>, %arg9: memref<1x1xf32, #tpu.memory_space<vmem>>, %arg10: memref<1x256xf32, #tpu.memory_space<vmem>>) attributes {dimension_semantics = [#tpu.dimension_semantics<parallel>], iteration_bounds = array<i64: 2>, scalar_prefetch = 0 : i64, scratch_operands = 0 : i64, tpu.core_type = #tpu.core_type<tc>, window_params = [{transform_indices = @transform_0, window_bounds = array<i64: 256, 32>}, {pipeline_mode = #tpu.pipeline_mode<synchronous>, transform_indices = @transform_1, window_bounds = array<i64: 16, 32>}, {pipeline_mode = #tpu.pipeline_mode<synchronous>, transform_indices = @transform_2, window_bounds = array<i64: 16, 1>}, {pipeline_mode = #tpu.pipeline_mode<synchronous>, transform_indices = @transform_3, window_bounds = array<i64: 8, 16>}, {pipeline_mode = #tpu.pipeline_mode<synchronous>, transform_indices = @transform_4, window_bounds = array<i64: 8, 1>}, {pipeline_mode = #tpu.pipeline_mode<synchronous>, transform_indices = @transform_5, window_bounds = array<i64: 4, 8>}, {pipeline_mode = #tpu.pipeline_mode<synchronous>, transform_indices = @transform_6, window_bounds = array<i64: 4, 1>}, {pipeline_mode = #tpu.pipeline_mode<synchronous>, transform_indices = @transform_7, window_bounds = array<i64: 4, 1>}, {pipeline_mode = #tpu.pipeline_mode<synchronous>, transform_indices = @transform_8, window_bounds = array<i64: 1, 1>}, {transform_indices = @transform_9, window_bounds = array<i64: 1, 256>}]} {
    %c0 = arith.constant 0 : index
    %c0_0 = arith.constant 0 : index
    %0 = vector.load %arg1[%c0, %c0_0] : memref<256x32xf32, #tpu.memory_space<vmem>>, vector<256x32xf32>
    %c0_1 = arith.constant 0 : index
    %c0_2 = arith.constant 0 : index
    %1 = vector.load %arg2[%c0_1, %c0_2] : memref<16x32xf32, #tpu.memory_space<vmem>>, vector<16x32xf32>
    %cst = arith.constant dense<0.000000e+00> : vector<16x256xf32>
    %2 = tpu.matmul %1, %0, %cst {dimension_numbers = #tpu.dot_dimension_numbers<[1], [1], [0], [0], [0, 0, 1, 0], [], []>} : vector<16x32xf32>, vector<256x32xf32>, vector<16x256xf32> -> vector<16x256xf32>
    %c0_3 = arith.constant 0 : index
    %c0_4 = arith.constant 0 : index
    %3 = vector.load %arg3[%c0_3, %c0_4] : memref<16x1xf32, #tpu.memory_space<vmem>>, vector<16x1xf32>
    %4 = vector.broadcast %3 : vector<16x1xf32> to vector<16x256xf32>
    %5 = arith.addf %2, %4 : vector<16x256xf32>
    %cst_5 = arith.constant 0.000000e+00 : f32
    %6 = vector.broadcast %cst_5 : f32 to vector<16x256xf32>
    %7 = arith.maximumf %5, %6 : vector<16x256xf32>
    %c0_6 = arith.constant 0 : index
    %c0_7 = arith.constant 0 : index
    %8 = vector.load %arg4[%c0_6, %c0_7] : memref<8x16xf32, #tpu.memory_space<vmem>>, vector<8x16xf32>
    %cst_8 = arith.constant dense<0.000000e+00> : vector<8x256xf32>
    %9 = tpu.matmul %8, %7, %cst_8 {dimension_numbers = #tpu.dot_dimension_numbers<[1], [0], [0], [1], [0, 0, 1, 1], [], []>} : vector<8x16xf32>, vector<16x256xf32>, vector<8x256xf32> -> vector<8x256xf32>
    %c0_9 = arith.constant 0 : index
    %c0_10 = arith.constant 0 : index
    %10 = vector.load %arg5[%c0_9, %c0_10] : memref<8x1xf32, #tpu.memory_space<vmem>>, vector<8x1xf32>
    %11 = vector.broadcast %10 : vector<8x1xf32> to vector<8x256xf32>
    %12 = arith.addf %9, %11 : vector<8x256xf32>
    %cst_11 = arith.constant 0.000000e+00 : f32
    %13 = vector.broadcast %cst_11 : f32 to vector<8x256xf32>
    %14 = arith.maximumf %12, %13 : vector<8x256xf32>
    %c0_12 = arith.constant 0 : index
    %c0_13 = arith.constant 0 : index
    %15 = vector.load %arg6[%c0_12, %c0_13] : memref<4x8xf32, #tpu.memory_space<vmem>>, vector<4x8xf32>
    %cst_14 = arith.constant dense<0.000000e+00> : vector<4x256xf32>
    %16 = tpu.matmul %15, %14, %cst_14 {dimension_numbers = #tpu.dot_dimension_numbers<[1], [0], [0], [1], [0, 0, 1, 1], [], []>} : vector<4x8xf32>, vector<8x256xf32>, vector<4x256xf32> -> vector<4x256xf32>
    %c0_15 = arith.constant 0 : index
    %c0_16 = arith.constant 0 : index
    %17 = vector.load %arg7[%c0_15, %c0_16] : memref<4x1xf32, #tpu.memory_space<vmem>>, vector<4x1xf32>
    %18 = vector.broadcast %17 : vector<4x1xf32> to vector<4x256xf32>
    %19 = arith.addf %16, %18 : vector<4x256xf32>
    %cst_17 = arith.constant 0.000000e+00 : f32
    %20 = vector.broadcast %cst_17 : f32 to vector<4x256xf32>
    %21 = arith.maximumf %19, %20 : vector<4x256xf32>
    %c0_18 = arith.constant 0 : index
    %c0_19 = arith.constant 0 : index
    %22 = vector.load %arg8[%c0_18, %c0_19] : memref<4x1xf32, #tpu.memory_space<vmem>>, vector<4x1xf32>
    %23 = vector.broadcast %22 : vector<4x1xf32> to vector<4x256xf32>
    %24 = arith.mulf %23, %21 : vector<4x256xf32>
    %cst_20 = arith.constant dense<0.000000e+00> : vector<256xf32>
    %25 = vector.multi_reduction <add>, %24, %cst_20 [0] : vector<4x256xf32> to vector<256xf32>
    %26 = vector.shape_cast %25 : vector<256xf32> to vector<1x256xf32>
    %c0_21 = arith.constant 0 : index
    %c0_22 = arith.constant 0 : index
    %27 = vector.load %arg9[%c0_21, %c0_22] : memref<1x1xf32, #tpu.memory_space<vmem>>, vector<1x1xf32>
    %28 = vector.broadcast %27 : vector<1x1xf32> to vector<1x256xf32>
    %29 = arith.addf %26, %28 : vector<1x256xf32>
    %cst_23 = arith.constant 0.000000e+00 : f32
    %30 = vector.broadcast %cst_23 : f32 to vector<1x256xf32>
    %31 = arith.maximumf %29, %30 : vector<1x256xf32>
    %c0_24 = arith.constant 0 : index
    %c0_25 = arith.constant 0 : index
    %32 = vector.load %arg10[%c0_24, %c0_25] : memref<1x256xf32, #tpu.memory_space<vmem>>, vector<1x256xf32>
    tpu.vector_store %arg10[%c0_24, %c0_25], %31 {strides = array<i32>} : memref<1x256xf32, #tpu.memory_space<vmem>>, vector<1x256xf32>,
    return
  }
  func.func @transform_0(%arg0: i32) -> (i32, i32) {
    %c0_i32 = arith.constant 0 : i32
    %c0_i32_0 = arith.constant 0 : i32
    return %arg0, %c0_i32 : i32, i32
  }
  func.func @transform_1(%arg0: i32) -> (i32, i32) {
    %c0_i32 = arith.constant 0 : i32
    %c0_i32_0 = arith.constant 0 : i32
    %c0_i32_1 = arith.constant 0 : i32
    return %c0_i32, %c0_i32_0 : i32, i32
  }
  func.func @transform_2(%arg0: i32) -> (i32, i32) {
    %c0_i32 = arith.constant 0 : i32
    %c0_i32_0 = arith.constant 0 : i32
    %c0_i32_1 = arith.constant 0 : i32
    return %c0_i32, %c0_i32_0 : i32, i32
  }
  func.func @transform_3(%arg0: i32) -> (i32, i32) {
    %c0_i32 = arith.constant 0 : i32
    %c0_i32_0 = arith.constant 0 : i32
    %c0_i32_1 = arith.constant 0 : i32
    return %c0_i32, %c0_i32_0 : i32, i32
  }
  func.func @transform_4(%arg0: i32) -> (i32, i32) {
    %c0_i32 = arith.constant 0 : i32
    %c0_i32_0 = arith.constant 0 : i32
    %c0_i32_1 = arith.constant 0 : i32
    return %c0_i32, %c0_i32_0 : i32, i32
  }
  func.func @transform_5(%arg0: i32) -> (i32, i32) {
    %c0_i32 = arith.constant 0 : i32
    %c0_i32_0 = arith.constant 0 : i32
    %c0_i32_1 = arith.constant 0 : i32
    return %c0_i32, %c0_i32_0 : i32, i32
  }
  func.func @transform_6(%arg0: i32) -> (i32, i32) {
    %c0_i32 = arith.constant 0 : i32
    %c0_i32_0 = arith.constant 0 : i32
    %c0_i32_1 = arith.constant 0 : i32
    return %c0_i32, %c0_i32_0 : i32, i32
  }
  func.func @transform_7(%arg0: i32) -> (i32, i32) {
    %c0_i32 = arith.constant 0 : i32
    %c0_i32_0 = arith.constant 0 : i32
    %c0_i32_1 = arith.constant 0 : i32
    return %c0_i32, %c0_i32_0 : i32, i32
  }
  func.func @transform_8(%arg0: i32) -> (i32, i32) {
    %c0_i32 = arith.constant 0 : i32
    %c0_i32_0 = arith.constant 0 : i32
    %c0_i32_1 = arith.constant 0 : i32
    return %c0_i32, %c0_i32_0 : i32, i32
  }
  func.func @transform_9(%arg0: i32) -> (i32, i32) {
    %c0_i32 = arith.constant 0 : i32
    %c0_i32_0 = arith.constant 0 : i32
    return %c0_i32, %arg0 : i32, i32
  }
}

</mosaic_0001>

<llo_original>
// kernel: regression_block_forward.1
$region0: #{regression_block_forward.1}
  #allocation0 [shape = 'u32[]', space=smem, size = 0x4, offset = 0x4, fixed_abs, tag = 'smem constant byte address 0x4 - core index']
  #allocation1 [shape = 'u32[144,128]{1,0:T(1,128)}', space=vmem, size = 0x12000, scoped, tag = 'internal scratch']
  #allocation2 [shape = 'f32[1,1]{1,0:T(1,128)S(1)}', space=vmem, size = 0x200, scoped, tag = 'scoped memory for regression_block_forward.1']
  %s0 = inlined_call_operand.vmem [shape: f32[512,32], index: 0, kind: input, shape index: {}]
  %s1 = inlined_call_operand.vmem [shape: f32[16,32], index: 1, kind: input, shape index: {}]
  %s2 = inlined_call_operand.vmem [shape: f32[16,1], index: 2, kind: input, shape index: {}]
  %s3 = inlined_call_operand.vmem [shape: f32[8,16], index: 3, kind: input, shape index: {}]
  %s4 = inlined_call_operand.vmem [shape: f32[8,1], index: 4, kind: input, shape index: {}]
  %s5 = inlined_call_operand.vmem [shape: f32[4,8], index: 5, kind: input, shape index: {}]
  %s6 = inlined_call_operand.vmem [shape: f32[4,1], index: 6, kind: input, shape index: {}]
  %s7 = inlined_call_operand.vmem [shape: f32[4,1], index: 7, kind: input, shape index: {}]
  %s8 = inlined_call_operand.<no memory space> [shape: f32[1,1], index: 8, kind: input, shape index: {}]
  %s9 = inlined_call_operand.vmem [shape: f32[1,512], index: 9, kind: output, shape index: {}]
  %s10 = sld [smem:[#allocation0]]
  $region69: #{regression_block_forward.1} parent=0
    _
  %s12 = ssub.s32 1, %s10
  %s13 = scalar_select 0, %s12, %s10
  %v14 = vstv %s8
  %15 = vst [vmem:[#allocation2] sm:$0x1] %v14
  loop: start=0, step=1, limit=4
  $region2: #{regression_block_forward.1} parent=0 // loop_pre_header
    _
  $region3: #{regression_block_forward.1} parent=0 // loop_header
    %s17 = sphi 0, %s21
    %p18 = scmp.ge.s32.totalorder %s17, 4
    %s27 = sphi 0, %s29
    %s30 = sphi 0, %s27
    %s31 = sphi 0, %s30
    %s47 = sphi 0, %s31
    %s51 = sphi 0, %s51
    %s53 = sphi 0, %s51
    %s54 = sphi 0, %s53
    %s68 = sphi 0, %s54
    %s72 = sphi 0, %s72
    %s74 = sphi 0, %s72
    %s75 = sphi 0, %s74
    %s89 = sphi 0, %s75
    %s93 = sphi 0, %s93
    %s95 = sphi 0, %s93
    %s96 = sphi 0, %s95
    %s110 = sphi 0, %s96
    %s114 = sphi 0, %s114
    %s116 = sphi 0, %s114
    %s117 = sphi 0, %s116
    %s131 = sphi 0, %s117
    %s135 = sphi 0, %s135
    %s137 = sphi 0, %s135
    %s138 = sphi 0, %s137
    %s152 = sphi 0, %s138
    %s156 = sphi 0, %s156
    %s158 = sphi 0, %s156
    %s159 = sphi 0, %s158
    %s173 = sphi 0, %s159
    %s177 = sphi 0, %s177
    %s179 = sphi 0, %s177
    %s180 = sphi 0, %s179
    %s194 = sphi 0, %s180
    %s198 = sphi 0, %s198
    %s200 = sphi 0, %s198
    %s201 = sphi 0, %s200
    %s215 = sphi 0, %s201
    %s221 = sphi 0, %s223
    %s224 = sphi 0, %s221
    %s225 = sphi 0, %s224
    %s241 = sphi 0, %s225
  $region4: #{regression_block_forward.1} parent=0 // loop_header_branch
    %20 = sbr.rel (%p18) target = $region8
  $region5: #{regression_block_forward.1} parent=0 // loop_body
    %s22 = ssub.s32 %s17, 1
    %s23 = ssub.s32 %s17, 2
    %s24 = sadd.s32 %s17, 1
    %s25 = ssub.s32 %s17, %s24
    %p26 = scmp.eq.s32.totalorder %s25, 0
    %s28 = sadd.s32 %s27, 1
    %s29 = scalar_select %p26, %s27, %s28
    %p32 = pneg %p26
    %p33 = scmp.eq.s32.totalorder %s17, 1
    %p34 = por %p32, %p33
    %p35 = scmp.ne.s32.totalorder %s27, %s30
    %p36 = scmp.eq.s32.totalorder %s17, 0
    %p37 = por %p35, %p36
    %p38 = scmp.ne.s32.totalorder %s27, %s30
    %p39 = scmp.eq.s32.totalorder %s22, 1
    %p40 = por %p38, %p39
    %p41 = scmp.ne.s32.totalorder %s30, %s31
    %p42 = scmp.eq.s32.totalorder %s22, 0
    %p43 = por %p41, %p42
    %p44 = scmp.ne.s32.totalorder %s30, %s31
    %p45 = scmp.eq.s32.totalorder %s23, 1
    %p46 = por %p44, %p45
    %p48 = scmp.ne.s32.totalorder %s31, %s47
    %p49 = scmp.eq.s32.totalorder %s23, 0
    %p50 = por %p48, %p49
    %s52 = sadd.s32 %s51, 1
    %p55 = scmp.eq.s32.totalorder %s17, 1
    %p56 = scmp.ne.s32.totalorder %s51, %s53
    %p57 = scmp.eq.s32.totalorder %s17, 0
    %p58 = por %p56, %p57
    %p59 = scmp.ne.s32.totalorder %s51, %s53
    %p60 = scmp.eq.s32.totalorder %s22, 1
    %p61 = por %p59, %p60
    %p62 = scmp.ne.s32.totalorder %s53, %s54
    %p63 = scmp.eq.s32.totalorder %s22, 0
    %p64 = por %p62, %p63
    %p65 = scmp.ne.s32.totalorder %s53, %s54
    %p66 = scmp.eq.s32.totalorder %s23, 1
    %p67 = por %p65, %p66
    %p69 = scmp.ne.s32.totalorder %s54, %s68
    %p70 = scmp.eq.s32.totalorder %s23, 0
    %p71 = por %p69, %p70
    %s73 = sadd.s32 %s72, 1
    %p76 = scmp.eq.s32.totalorder %s17, 1
    %p77 = scmp.ne.s32.totalorder %s72, %s74
    %p78 = scmp.eq.s32.totalorder %s17, 0
    %p79 = por %p77, %p78
    %p80 = scmp.ne.s32.totalorder %s72, %s74
    %p81 = scmp.eq.s32.totalorder %s22, 1
    %p82 = por %p80, %p81
    %p83 = scmp.ne.s32.totalorder %s74, %s75
    %p84 = scmp.eq.s32.totalorder %s22, 0
    %p85 = por %p83, %p84
    %p86 = scmp.ne.s32.totalorder %s74, %s75
    %p87 = scmp.eq.s32.totalorder %s23, 1
    %p88 = por %p86, %p87
    %p90 = scmp.ne.s32.totalorder %s75, %s89
    %p91 = scmp.eq.s32.totalorder %s23, 0
    %p92 = por %p90, %p91
    %s94 = sadd.s32 %s93, 1
    %p97 = scmp.eq.s32.totalorder %s17, 1
    %p98 = scmp.ne.s32.totalorder %s93, %s95
    %p99 = scmp.eq.s32.totalorder %s17, 0
    %p100 = por %p98, %p99
    %p101 = scmp.ne.s32.totalorder %s93, %s95
    %p102 = scmp.eq.s32.totalorder %s22, 1
    %p103 = por %p101, %p102
    %p104 = scmp.ne.s32.totalorder %s95, %s96
    %p105 = scmp.eq.s32.totalorder %s22, 0
    %p106 = por %p104, %p105
    %p107 = scmp.ne.s32.totalorder %s95, %s96
    %p108 = scmp.eq.s32.totalorder %s23, 1
    %p109 = por %p107, %p108
    %p111 = scmp.ne.s32.totalorder %s96, %s110
    %p112 = scmp.eq.s32.totalorder %s23, 0
    %p113 = por %p111, %p112
    %s115 = sadd.s32 %s114, 1
    %p118 = scmp.eq.s32.totalorder %s17, 1
    %p119 = scmp.ne.s32.totalorder %s114, %s116
    %p120 = scmp.eq.s32.totalorder %s17, 0
    %p121 = por %p119, %p120
    %p122 = scmp.ne.s32.totalorder %s114, %s116
    %p123 = scmp.eq.s32.totalorder %s22, 1
    %p124 = por %p122, %p123
    %p125 = scmp.ne.s32.totalorder %s116, %s117
    %p126 = scmp.eq.s32.totalorder %s22, 0
    %p127 = por %p125, %p126
    %p128 = scmp.ne.s32.totalorder %s116, %s117
    %p129 = scmp.eq.s32.totalorder %s23, 1
    %p130 = por %p128, %p129
    %p132 = scmp.ne.s32.totalorder %s117, %s131
    %p133 = scmp.eq.s32.totalorder %s23, 0
    %p134 = por %p132, %p133
    %s136 = sadd.s32 %s135, 1
    %p139 = scmp.eq.s32.totalorder %s17, 1
    %p140 = scmp.ne.s32.totalorder %s135, %s137
    %p141 = scmp.eq.s32.totalorder %s17, 0
    %p142 = por %p140, %p141
    %p143 = scmp.ne.s32.totalorder %s135, %s137
    %p144 = scmp.eq.s32.totalorder %s22, 1
    %p145 = por %p143, %p144
    %p146 = scmp.ne.s32.totalorder %s137, %s138
    %p147 = scmp.eq.s32.totalorder %s22, 0
    %p148 = por %p146, %p147
    %p149 = scmp.ne.s32.totalorder %s137, %s138
    %p150 = scmp.eq.s32.totalorder %s23, 1
    %p151 = por %p149, %p150
    %p153 = scmp.ne.s32.totalorder %s138, %s152
    %p154 = scmp.eq.s32.totalorder %s23, 0
    %p155 = por %p153, %p154
    %s157 = sadd.s32 %s156, 1
    %p160 = scmp.eq.s32.totalorder %s17, 1
    %p161 = scmp.ne.s32.totalorder %s156, %s158
    %p162 = scmp.eq.s32.totalorder %s17, 0
    %p163 = por %p161, %p162
    %p164 = scmp.ne.s32.totalorder %s156, %s158
    %p165 = scmp.eq.s32.totalorder %s22, 1
    %p166 = por %p164, %p165
    %p167 = scmp.ne.s32.totalorder %s158, %s159
    %p168 = scmp.eq.s32.totalorder %s22, 0
    %p169 = por %p167, %p168
    %p170 = scmp.ne.s32.totalorder %s158, %s159
    %p171 = scmp.eq.s32.totalorder %s23, 1
    %p172 = por %p170, %p171
    %p174 = scmp.ne.s32.totalorder %s159, %s173
    %p175 = scmp.eq.s32.totalorder %s23, 0
    %p176 = por %p174, %p175
    %s178 = sadd.s32 %s177, 1
    %p181 = scmp.eq.s32.totalorder %s17, 1
    %p182 = scmp.ne.s32.totalorder %s177, %s179
    %p183 = scmp.eq.s32.totalorder %s17, 0
    %p184 = por %p182, %p183
    %p185 = scmp.ne.s32.totalorder %s177, %s179
    %p186 = scmp.eq.s32.totalorder %s22, 1
    %p187 = por %p185, %p186
    %p188 = scmp.ne.s32.totalorder %s179, %s180
    %p189 = scmp.eq.s32.totalorder %s22, 0
    %p190 = por %p188, %p189
    %p191 = scmp.ne.s32.totalorder %s179, %s180
    %p192 = scmp.eq.s32.totalorder %s23, 1
    %p193 = por %p191, %p192
    %p195 = scmp.ne.s32.totalorder %s180, %s194
    %p196 = scmp.eq.s32.totalorder %s23, 0
    %p197 = por %p195, %p196
    %s199 = sadd.s32 %s198, 1
    %p202 = scmp.eq.s32.totalorder %s17, 1
    %p203 = scmp.ne.s32.totalorder %s198, %s200
    %p204 = scmp.eq.s32.totalorder %s17, 0
    %p205 = por %p203, %p204
    %p206 = scmp.ne.s32.totalorder %s198, %s200
    %p207 = scmp.eq.s32.totalorder %s22, 1
    %p208 = por %p206, %p207
    %p209 = scmp.ne.s32.totalorder %s200, %s201
    %p210 = scmp.eq.s32.totalorder %s22, 0
    %p211 = por %p209, %p210
    %p212 = scmp.ne.s32.totalorder %s200, %s201
    %p213 = scmp.eq.s32.totalorder %s23, 1
    %p214 = por %p212, %p213
    %p216 = scmp.ne.s32.totalorder %s201, %s215
    %p217 = scmp.eq.s32.totalorder %s23, 0
    %p218 = por %p216, %p217
    %s219 = ssub.s32 %s17, %s24
    %p220 = scmp.eq.s32.totalorder %s219, 0
    %s222 = sadd.s32 %s221, 1
    %s223 = scalar_select %p220, %s221, %s222
    %p226 = pneg %p220
    %p227 = scmp.eq.s32.totalorder %s17, 1
    %p228 = por %p226, %p227
    %p229 = scmp.ne.s32.totalorder %s221, %s224
    %p230 = scmp.eq.s32.totalorder %s17, 0
    %p231 = por %p229, %p230
    %p232 = scmp.ne.s32.totalorder %s221, %s224
    %p233 = scmp.eq.s32.totalorder %s22, 1
    %p234 = por %p232, %p233
    %p235 = scmp.ne.s32.totalorder %s224, %s225
    %p236 = scmp.eq.s32.totalorder %s22, 0
    %p237 = por %p235, %p236
    %p238 = scmp.ne.s32.totalorder %s224, %s225
    %p239 = scmp.eq.s32.totalorder %s23, 1
    %p240 = por %p238, %p239
    %p242 = scmp.ne.s32.totalorder %s225, %s241
    %p243 = scmp.eq.s32.totalorder %s23, 0
    %p244 = por %p242, %p243
    %p245 = scmp.le.s32.totalorder 1, %s17
    %p246 = scmp.lt.s32.totalorder %s17, 3
    %p247 = pnand %p245, %p246
    %p248 = pneg %p247
    // Predicated region
    $region9: #{regression_block_forward.1} parent=5 // pred_check
      _
    $region10: #{regression_block_forward.1} parent=5 // pred_check_branch
      %250 = sbr.rel (%p247) target = $region12
    $region11: #{regression_block_forward.1} parent=5 // pred_region
      %s251 = ssub.s32 %s17, 1
      // Predicated region
      $region13: #{regression_block_forward.1} parent=11 // pred_check
        %p252 = pneg %p64
      $region14: #{regression_block_forward.1} parent=11 // pred_check_branch
        %254 = sbr.rel (%p252) target = $region16
      $region15: #{regression_block_forward.1} parent=11 // pred_region
        _
      $region16: #{regression_block_forward.1} parent=11 // pred_fallthru
        _
      // Predicated region
      $region17: #{regression_block_forward.1} parent=11 // pred_check
        %p255 = pneg %p85
      $region18: #{regression_block_forward.1} parent=11 // pred_check_branch
        %257 = sbr.rel (%p255) target = $region20
      $region19: #{regression_block_forward.1} parent=11 // pred_region
        _
      $region20: #{regression_block_forward.1} parent=11 // pred_fallthru
        _
      // Predicated region
      $region21: #{regression_block_forward.1} parent=11 // pred_check
        %p258 = pneg %p106
      $region22: #{regression_block_forward.1} parent=11 // pred_check_branch
        %260 = sbr.rel (%p258) target = $region24
      $region23: #{regression_block_forward.1} parent=11 // pred_region
        _
      $region24: #{regression_block_forward.1} parent=11 // pred_fallthru
        _
      // Predicated region
      $region25: #{regression_block_forward.1} parent=11 // pred_check
        %p261 = pneg %p127
      $region26: #{regression_block_forward.1} parent=11 // pred_check_branch
        %263 = sbr.rel (%p261) target = $region28
      $region27: #{regression_block_forward.1} parent=11 // pred_region
        _
      $region28: #{regression_block_forward.1} parent=11 // pred_fallthru
        _
      // Predicated region
      $region29: #{regression_block_forward.1} parent=11 // pred_check
        %p264 = pneg %p148
      $region30: #{regression_block_forward.1} parent=11 // pred_check_branch
        %266 = sbr.rel (%p264) target = $region32
      $region31: #{regression_block_forward.1} parent=11 // pred_region
        _
      $region32: #{regression_block_forward.1} parent=11 // pred_fallthru
        _
      // Predicated region
      $region33: #{regression_block_forward.1} parent=11 // pred_check
        %p267 = pneg %p169
      $region34: #{regression_block_forward.1} parent=11 // pred_check_branch
        %269 = sbr.rel (%p267) target = $region36
      $region35: #{regression_block_forward.1} parent=11 // pred_region
        _
      $region36: #{regression_block_forward.1} parent=11 // pred_fallthru
        _
      // Predicated region
      $region37: #{regression_block_forward.1} parent=11 // pred_check
        %p270 = pneg %p190
      $region38: #{regression_block_forward.1} parent=11 // pred_check_branch
        %272 = sbr.rel (%p270) target = $region40
      $region39: #{regression_block_forward.1} parent=11 // pred_region
        _
      $region40: #{regression_block_forward.1} parent=11 // pred_fallthru
        _
      // Predicated region
      $region41: #{regression_block_forward.1} parent=11 // pred_check
        %p273 = pneg %p211
      $region42: #{regression_block_forward.1} parent=11 // pred_check_branch
        %275 = sbr.rel (%p273) target = $region44
      $region43: #{regression_block_forward.1} parent=11 // pred_region
        _
      $region44: #{regression_block_forward.1} parent=11 // pred_fallthru
        _
    $region12: #{regression_block_forward.1} parent=5 // pred_fallthru
      _
    %p276 = scmp.lt.s32.totalorder %s17, 2
    // Predicated region
    $region45: #{regression_block_forward.1} parent=5 // pred_check
      %p277 = pneg %p276
    $region46: #{regression_block_forward.1} parent=5 // pred_check_branch
      %279 = sbr.rel (%p277) target = $region48
    $region47: #{regression_block_forward.1} parent=5 // pred_region
      // Predicated region
      $region49: #{regression_block_forward.1} parent=47 // pred_check
        %p280 = pneg %p37
      $region50: #{regression_block_forward.1} parent=47 // pred_check_branch
        %282 = sbr.rel (%p280) target = $region52
      $region51: #{regression_block_forward.1} parent=47 // pred_region
        %s283 = smul.u32 32, %s17
        %p284 = scmp.lt.s32.totalorder %s283, 63
        %s285 = scalar_select %p284, %s283, 63
        %s286 = smul.addr %s285, 8
        %s287 = scalar_lea.vmem %s0, %s286
        %s288 = smul.u32 32, %s17
      $region52: #{regression_block_forward.1} parent=47 // pred_fallthru
        _
    $region48: #{regression_block_forward.1} parent=5 // pred_fallthru
      _
    %p289 = scmp.le.s32.totalorder 1, %s17
    %p290 = scmp.lt.s32.totalorder %s17, 3
    %p291 = pnand %p289, %p290
    %p292 = pneg %p291
    // Predicated region
    $region53: #{regression_block_forward.1} parent=5 // pred_check
      _
    $region54: #{regression_block_forward.1} parent=5 // pred_check_branch
      %294 = sbr.rel (%p291) target = $region56
    $region55: #{regression_block_forward.1} parent=5 // pred_region
      %s295 = ssub.s32 %s17, 1
      %s296 = smul.u32 32, %s22
      %p297 = scmp.lt.s32.totalorder %s296, 63
      %s298 = scalar_select %p297, %s296, 63
      %s299 = smul.addr %s298, 8
      %s300 = scalar_lea.vmem %s0, %s299
      %p301 = pneg %p43
      %p302 = pneg %p40
      %p303 = pneg %p64
      %p304 = pneg %p61
      %p305 = pneg %p85
      %p306 = pneg %p82
      %p307 = pneg %p106
      %p308 = pneg %p103
      %p309 = pneg %p127
      %p310 = pneg %p124
      %p311 = pneg %p148
      %p312 = pneg %p145
      %p313 = pneg %p169
      %p314 = pneg %p166
      %p315 = pneg %p190
      %p316 = pneg %p187
      %p317 = pneg %p211
      %p318 = pneg %p208
      %p319 = pneg %p237
      %p320 = pneg %p234
      %s321 = smul.u32 2, %s22
      %p322 = scmp.lt.s32.totalorder %s321, 3
      %s323 = scalar_select %p322, %s321, 3
      %s324 = scalar_lea.vmem %s9, %s323
      %s325 = smul.u32 32, %s22
      %p326 = scmp.lt.s32.totalorder %s325, 63
      %s327 = scalar_select %p326, %s325, 63
      %s328 = smul.addr %s327, 8
      %s329 = scalar_lea.vmem %s0, %s328
      %s330 = smul.u32 32, %s22
      %s331 = smul.u32 2, %s22
      %p332 = scmp.lt.s32.totalorder %s331, 3
      %s333 = scalar_select %p332, %s331, 3
      %s334 = scalar_lea.vmem %s9, %s333
      %s335 = smul.u32 2, %s22
      %v336 = vld [vmem:[%s329] sm:$0xff]
      %v337 = vld [vmem:[%s329 + $0x8] sm:$0xff]
      %v338 = vld [vmem:[%s329 + $0x10] sm:$0xff]
      %v339 = vld [vmem:[%s329 + $0x18] sm:$0xff]
      %v340 = vld [vmem:[%s329 + $0x20] sm:$0xff]
      %v341 = vld [vmem:[%s329 + $0x28] sm:$0xff]
      %v342 = vld [vmem:[%s329 + $0x30] sm:$0xff]
      %v343 = vld [vmem:[%s329 + $0x38] sm:$0xff]
      %v344 = vld [vmem:[%s329 + $0x40] sm:$0xff]
      %v345 = vld [vmem:[%s329 + $0x48] sm:$0xff]
      %v346 = vld [vmem:[%s329 + $0x50] sm:$0xff]
      %v347 = vld [vmem:[%s329 + $0x58] sm:$0xff]
      %v348 = vld [vmem:[%s329 + $0x60] sm:$0xff]
      %v349 = vld [vmem:[%s329 + $0x68] sm:$0xff]
      %v350 = vld [vmem:[%s329 + $0x70] sm:$0xff]
      %v351 = vld [vmem:[%s329 + $0x78] sm:$0xff]
      %v352 = vld [vmem:[%s329 + $0x80] sm:$0xff]
      %v353 = vld [vmem:[%s329 + $0x88] sm:$0xff]
      %v354 = vld [vmem:[%s329 + $0x90] sm:$0xff]
      %v355 = vld [vmem:[%s329 + $0x98] sm:$0xff]
      %v356 = vld [vmem:[%s329 + $0xa0] sm:$0xff]
      %v357 = vld [vmem:[%s329 + $0xa8] sm:$0xff]
      %v358 = vld [vmem:[%s329 + $0xb0] sm:$0xff]
      %v359 = vld [vmem:[%s329 + $0xb8] sm:$0xff]
      %v360 = vld [vmem:[%s329 + $0xc0] sm:$0xff]
      %v361 = vld [vmem:[%s329 + $0xc8] sm:$0xff]
      %v362 = vld [vmem:[%s329 + $0xd0] sm:$0xff]
      %v363 = vld [vmem:[%s329 + $0xd8] sm:$0xff]
      %v364 = vld [vmem:[%s329 + $0xe0] sm:$0xff]
      %v365 = vld [vmem:[%s329 + $0xe8] sm:$0xff]
      %v366 = vld [vmem:[%s329 + $0xf0] sm:$0xff]
      %v367 = vld [vmem:[%s329 + $0xf8] sm:$0xff]
      %v368 = vld [vmem:[%s1] sm:$0xff]
      %v369 = vld [vmem:[%s1 + $0x8] sm:$0xff]
      %v370 = vld [vmem:[%s2] sm:$0xff]
      %v371 = vld [vmem:[%s2 + $0x8] sm:$0xff]
      %373 = vset.pattern.permute.xlu0 0
      %374 = vperm.xlu0 %373, %v370
      %v375 = vpop.permute.xlu0 %374
      %378 = vset.pattern.permute.xlu0 0
      %379 = vperm.xlu0 %378, %v371
      %v380 = vpop.permute.xlu0 %379
      %vm382 = vcmask 261120
      %v384 = vsel %vm382, %v368, 0
      %v387 = vsel %vm382, %v369, 0
      %v390 = vsel %vm382, %v336, 0
      %v393 = vsel %vm382, %v337, 0
      %v396 = vsel %vm382, %v338, 0
      %v399 = vsel %vm382, %v339, 0
      %v402 = vsel %vm382, %v340, 0
      %v405 = vsel %vm382, %v341, 0
      %v408 = vsel %vm382, %v342, 0
      %v411 = vsel %vm382, %v343, 0
      %v414 = vsel %vm382, %v344, 0
      %v417 = vsel %vm382, %v345, 0
      %v420 = vsel %vm382, %v346, 0
      %v423 = vsel %vm382, %v347, 0
      %v426 = vsel %vm382, %v348, 0
      %v429 = vsel %vm382, %v349, 0
      %v432 = vsel %vm382, %v350, 0
      %v435 = vsel %vm382, %v351, 0
      %v438 = vsel %vm382, %v352, 0
      %v441 = vsel %vm382, %v353, 0
      %v444 = vsel %vm382, %v354, 0
      %v447 = vsel %vm382, %v355, 0
      %v450 = vsel %vm382, %v356, 0
      %v453 = vsel %vm382, %v357, 0
      %v456 = vsel %vm382, %v358, 0
      %v459 = vsel %vm382, %v359, 0
      %v462 = vsel %vm382, %v360, 0
      %v465 = vsel %vm382, %v361, 0
      %v468 = vsel %vm382, %v362, 0
      %v471 = vsel %vm382, %v363, 0
      %v474 = vsel %vm382, %v364, 0
      %v477 = vsel %vm382, %v365, 0
      %v480 = vsel %vm382, %v366, 0
      %v483 = vsel %vm382, %v367, 0
      %485 = vmatprep.subr.mxu0 0.0
      %486 = vmatpush1.xpose.msra.mxu0 %v390
      %487 = vmatprep.subr.mxu0 0.0
      %488 = vmatpush1.xpose.msra.mxu0 %v393
      %489 = vmatprep.subr.mxu0 0.0
      %490 = vmatpush1.xpose.msra.mxu0 %v396
      %491 = vmatprep.subr.mxu0 0.0
      %492 = vmatpush1.xpose.msra.mxu0 %v399
      %493 = vmatprep.subr.mxu0 0.0
      %494 = vmatpush1.xpose.msra.mxu0 %v402
      %495 = vmatprep.subr.mxu0 0.0
      %496 = vmatpush1.xpose.msra.mxu0 %v405
      %497 = vmatprep.subr.mxu0 0.0
      %498 = vmatpush1.xpose.msra.mxu0 %v408
      %499 = vmatprep.subr.mxu0 0.0
      %500 = vmatpush1.xpose.msra.mxu0 %v411
      %501 = vmatprep.subr.mxu0 0.0
      %502 = vmatpush1.xpose.msra.mxu0 %v414
      %503 = vmatprep.subr.mxu0 0.0
      %504 = vmatpush1.xpose.msra.mxu0 %v417
      %505 = vmatprep.subr.mxu0 0.0
      %506 = vmatpush1.xpose.msra.mxu0 %v420
      %507 = vmatprep.subr.mxu0 0.0
      %508 = vmatpush1.xpose.msra.mxu0 %v423
      %509 = vmatprep.subr.mxu0 0.0
      %510 = vmatpush1.xpose.msra.mxu0 %v426
      %511 = vmatprep.subr.mxu0 0.0
      %512 = vmatpush1.xpose.msra.mxu0 %v429
      %513 = vmatprep.subr.mxu0 0.0
      %514 = vmatpush1.xpose.msra.mxu0 %v432
      %515 = vmatprep.subr.mxu0 0.0
      %516 = vmatpush1.xpose.msra.mxu0 %v435
      %517 = vmatprep.subr.mxu0 0.0
      %518 = vmatpush1.xpose.msra.mxu0 %v438
      %519 = vmatprep.subr.mxu0 0.0
      %520 = vmatpush1.xpose.msra.mxu0 %v441
      %521 = vmatprep.subr.mxu0 0.0
      %522 = vmatpush1.xpose.msra.mxu0 %v444
      %523 = vmatprep.subr.mxu0 0.0
      %524 = vmatpush1.xpose.msra.mxu0 %v447
      %525 = vmatprep.subr.mxu0 0.0
      %526 = vmatpush1.xpose.msra.mxu0 %v450
      %527 = vmatprep.subr.mxu0 0.0
      %528 = vmatpush1.xpose.msra.mxu0 %v453
      %529 = vmatprep.subr.mxu0 0.0
      %530 = vmatpush1.xpose.msra.mxu0 %v456
      %531 = vmatprep.subr.mxu0 0.0
      %532 = vmatpush1.xpose.msra.mxu0 %v459
      %533 = vmatprep.subr.mxu0 0.0
      %534 = vmatpush1.xpose.msra.mxu0 %v462
      %535 = vmatprep.subr.mxu0 0.0
      %536 = vmatpush1.xpose.msra.mxu0 %v465
      %537 = vmatprep.subr.mxu0 0.0
      %538 = vmatpush1.xpose.msra.mxu0 %v468
      %539 = vmatprep.subr.mxu0 0.0
      %540 = vmatpush1.xpose.msra.mxu0 %v471
      %541 = vmatprep.subr.mxu0 0.0
      %542 = vmatpush1.xpose.msra.mxu0 %v474
      %543 = vmatprep.subr.mxu0 0.0
      %544 = vmatpush1.xpose.msra.mxu0 %v477
      %545 = vmatprep.subr.mxu0 0.0
      %546 = vmatpush1.xpose.msra.mxu0 %v480
      %547 = vmatprep.subr.mxu0 0.0
      %548 = vmatpush1.xpose.msra.mxu0 %v483
      %549 = vmatprep.mubr.f32.mxu0 0.0
      %550 = vmatmul.mubr.f32.gmra.mrb[0].mxu0 %v384
      %v551 = vpop.f32.mrb[0].mxu0
      %v552 = vadd.f32 %v375, %v551
      %v553 = vpop.f32.mrb[0].mxu0
      %v554 = vadd.f32 %v375, %v553
      %555 = vmatprep.mubr.f32.mxu0 0.0
      %556 = vmatmul.mubr.f32.gmra.mrb[0].mxu0 %v387
      %v557 = vpop.f32.mrb[0].mxu0
      %v558 = vadd.f32 %v380, %v557
      %v559 = vpop.f32.mrb[0].mxu0
      %v560 = vadd.f32 %v380, %v559
      %561 = vdwg.mxu0
      %v562 = vmax.f32 %v552, 0.0
      %v563 = vmax.f32 %v554, 0.0
      %v564 = vmax.f32 %v558, 0.0
      %v565 = vmax.f32 %v560, 0.0
      %v566 = vld [vmem:[%s3] sm:$0xff]
      %v567 = vld [vmem:[%s4] sm:$0xff]
      %569 = vset.pattern.permute.xlu0 0
      %570 = vperm.xlu0 %569, %v567
      %v571 = vpop.permute.xlu0 %570
      %vm573 = vcmask 130048
      %v575 = vsel %vm573, %v566, 0
      %577 = vmatprep.subr.mxu0 %v563
      %578 = vmatpush1.msra.mxu0 %v562
      %579 = vmatprep.subr.mxu0 %v565
      %580 = vmatpush1.msra.mxu0 %v564
      %581 = vmatprep.subr.mxu0 0.0
      %582 = vmatpush1.msra.mxu0 0.0
      %583 = vmatprep.subr.mxu0 0.0
      %584 = vmatpush1.msra.mxu0 0.0
      %585 = vmatprep.subr.mxu0 0.0
      %586 = vmatpush1.msra.mxu0 0.0
      %587 = vmatprep.subr.mxu0 0.0
      %588 = vmatpush1.msra.mxu0 0.0
      %589 = vmatprep.subr.mxu0 0.0
      %590 = vmatpush1.msra.mxu0 0.0
      %591 = vmatprep.subr.mxu0 0.0
      %592 = vmatpush1.msra.mxu0 0.0
      %593 = vmatprep.subr.mxu0 0.0
      %594 = vmatpush1.msra.mxu0 0.0
      %595 = vmatprep.subr.mxu0 0.0
      %596 = vmatpush1.msra.mxu0 0.0
      %597 = vmatprep.subr.mxu0 0.0
      %598 = vmatpush1.msra.mxu0 0.0
      %599 = vmatprep.subr.mxu0 0.0
      %600 = vmatpush1.msra.mxu0 0.0
      %601 = vmatprep.subr.mxu0 0.0
      %602 = vmatpush1.msra.mxu0 0.0
      %603 = vmatprep.subr.mxu0 0.0
      %604 = vmatpush1.msra.mxu0 0.0
      %605 = vmatprep.subr.mxu0 0.0
      %606 = vmatpush1.msra.mxu0 0.0
      %607 = vmatprep.subr.mxu0 0.0
      %608 = vmatpush1.msra.mxu0 0.0
      %609 = vmatprep.subr.mxu0 0.0
      %610 = vmatpush1.msra.mxu0 0.0
      %611 = vmatprep.subr.mxu0 0.0
      %612 = vmatpush1.msra.mxu0 0.0
      %613 = vmatprep.subr.mxu0 0.0
      %614 = vmatpush1.msra.mxu0 0.0
      %615 = vmatprep.subr.mxu0 0.0
      %616 = vmatpush1.msra.mxu0 0.0
      %617 = vmatprep.subr.mxu0 0.0
      %618 = vmatpush1.msra.mxu0 0.0
      %619 = vmatprep.subr.mxu0 0.0
      %620 = vmatpush1.msra.mxu0 0.0
      %621 = vmatprep.subr.mxu0 0.0
      %622 = vmatpush1.msra.mxu0 0.0
      %623 = vmatprep.subr.mxu0 0.0
      %624 = vmatpush1.msra.mxu0 0.0
      %625 = vmatprep.subr.mxu0 0.0
      %626 = vmatpush1.msra.mxu0 0.0
      %627 = vmatprep.subr.mxu0 0.0
      %628 = vmatpush1.msra.mxu0 0.0
      %629 = vmatprep.subr.mxu0 0.0
      %630 = vmatpush1.msra.mxu0 0.0
      %631 = vmatprep.subr.mxu0 0.0
      %632 = vmatpush1.msra.mxu0 0.0
      %633 = vmatprep.subr.mxu0 0.0
      %634 = vmatpush1.msra.mxu0 0.0
      %635 = vmatprep.subr.mxu0 0.0
      %636 = vmatpush1.msra.mxu0 0.0
      %637 = vmatprep.subr.mxu0 0.0
      %638 = vmatpush1.msra.mxu0 0.0
      %639 = vmatprep.subr.mxu0 0.0
      %640 = vmatpush1.msra.mxu0 0.0
      %641 = vmatprep.mubr.f32.mxu0 0.0
      %642 = vmatmul.mubr.f32.gmra.mrb[0].mxu0 %v575
      %v643 = vpop.f32.mrb[0].mxu0
      %v644 = vadd.f32 %v571, %v643
      %v645 = vpop.f32.mrb[0].mxu0
      %v646 = vadd.f32 %v571, %v645
      %647 = vdwg.mxu0
      %v648 = vmax.f32 %v644, 0.0
      %v649 = vmax.f32 %v646, 0.0
      %v650 = vld [vmem:[%s5] sm:$0xf]
      %v651 = vld [vmem:[%s6] sm:$0xf]
      %653 = vset.pattern.permute.xlu0 0
      %654 = vperm.xlu0 %653, %v651
      %v655 = vpop.permute.xlu0 %654
      %vm657 = vcmask 64512
      %v659 = vsel %vm657, %v650, 0
      %661 = vmatprep.subr.mxu0 %v649
      %662 = vmatpush1.msra.mxu0 %v648
      %663 = vmatprep.subr.mxu0 0.0
      %664 = vmatpush1.msra.mxu0 0.0
      %665 = vmatprep.subr.mxu0 0.0
      %666 = vmatpush1.msra.mxu0 0.0
      %667 = vmatprep.subr.mxu0 0.0
      %668 = vmatpush1.msra.mxu0 0.0
      %669 = vmatprep.subr.mxu0 0.0
      %670 = vmatpush1.msra.mxu0 0.0
      %671 = vmatprep.subr.mxu0 0.0
      %672 = vmatpush1.msra.mxu0 0.0
      %673 = vmatprep.subr.mxu0 0.0
      %674 = vmatpush1.msra.mxu0 0.0
      %675 = vmatprep.subr.mxu0 0.0
      %676 = vmatpush1.msra.mxu0 0.0
      %677 = vmatprep.subr.mxu0 0.0
      %678 = vmatpush1.msra.mxu0 0.0
      %679 = vmatprep.subr.mxu0 0.0
      %680 = vmatpush1.msra.mxu0 0.0
      %681 = vmatprep.subr.mxu0 0.0
      %682 = vmatpush1.msra.mxu0 0.0
      %683 = vmatprep.subr.mxu0 0.0
      %684 = vmatpush1.msra.mxu0 0.0
      %685 = vmatprep.subr.mxu0 0.0
      %686 = vmatpush1.msra.mxu0 0.0
      %687 = vmatprep.subr.mxu0 0.0
      %688 = vmatpush1.msra.mxu0 0.0
      %689 = vmatprep.subr.mxu0 0.0
      %690 = vmatpush1.msra.mxu0 0.0
      %691 = vmatprep.subr.mxu0 0.0
      %692 = vmatpush1.msra.mxu0 0.0
      %693 = vmatprep.subr.mxu0 0.0
      %694 = vmatpush1.msra.mxu0 0.0
      %695 = vmatprep.subr.mxu0 0.0
      %696 = vmatpush1.msra.mxu0 0.0
      %697 = vmatprep.subr.mxu0 0.0
      %698 = vmatpush1.msra.mxu0 0.0
      %699 = vmatprep.subr.mxu0 0.0
      %700 = vmatpush1.msra.mxu0 0.0
      %701 = vmatprep.subr.mxu0 0.0
      %702 = vmatpush1.msra.mxu0 0.0
      %703 = vmatprep.subr.mxu0 0.0
      %704 = vmatpush1.msra.mxu0 0.0
      %705 = vmatprep.subr.mxu0 0.0
      %706 = vmatpush1.msra.mxu0 0.0
      %707 = vmatprep.subr.mxu0 0.0
      %708 = vmatpush1.msra.mxu0 0.0
      %709 = vmatprep.subr.mxu0 0.0
      %710 = vmatpush1.msra.mxu0 0.0
      %711 = vmatprep.subr.mxu0 0.0
      %712 = vmatpush1.msra.mxu0 0.0
      %713 = vmatprep.subr.mxu0 0.0
      %714 = vmatpush1.msra.mxu0 0.0
      %715 = vmatprep.subr.mxu0 0.0
      %716 = vmatpush1.msra.mxu0 0.0
      %717 = vmatprep.subr.mxu0 0.0
      %718 = vmatpush1.msra.mxu0 0.0
      %719 = vmatprep.subr.mxu0 0.0
      %720 = vmatpush1.msra.mxu0 0.0
      %721 = vmatprep.subr.mxu0 0.0
      %722 = vmatpush1.msra.mxu0 0.0
      %723 = vmatprep.subr.mxu0 0.0
      %724 = vmatpush1.msra.mxu0 0.0
      %725 = vmatprep.mubr.f32.mxu0 0.0
      %726 = vmatmul.mubr.f32.gmra.mrb[0].mxu0 %v659
      %v727 = vpop.f32.mrb[0].mxu0
      %v728 = vadd.f32 %v655, %v727
      %v729 = vpop.f32.mrb[0].mxu0
      %v730 = vadd.f32 %v655, %v729
      %731 = vdwg.mxu0
      %v732 = vmax.f32 %v728, 0.0
      %v733 = vmax.f32 %v730, 0.0
      %v734 = vld [vmem:[%s7] sm:$0xf]
      %736 = vset.pattern.permute.xlu0 0
      %737 = vperm.xlu0 %736, %v734
      %v738 = vpop.permute.xlu0 %737
      %v740 = vmul.f32 %v738, %v732
      %v741 = vmul.f32 %v738, %v733
      %vm742 = vcmask 1043456
      %v743 = vsel %vm742, %v740, 0.0
      %v744 = vrot.slane %v743, 4
      %v745 = vadd.f32 %v743, %v744
      %v746 = vrot.slane %v745, 2
      %v747 = vadd.f32 %v745, %v746
      %v748 = vrot.slane %v747, 1
      %v749 = vadd.f32 %v747, %v748
      %v750 = vsel %vm742, %v741, 0.0
      %v751 = vrot.slane %v750, 4
      %v752 = vadd.f32 %v750, %v751
      %v753 = vrot.slane %v752, 2
      %v754 = vadd.f32 %v752, %v753
      %v755 = vrot.slane %v754, 1
      %v756 = vadd.f32 %v754, %v755
      %v757 = vld [vmem:[#allocation2] sm:$0x1]
      %759 = vset.pattern.permute.xlu0 0
      %760 = vperm.xlu0 %759, %v757
      %v761 = vpop.permute.xlu0 %760
      %v763 = vlaneseq
      %v764 = vshrl.u32 %v763, 7
      %v765 = vsub.s32 0, %v764
      %v766 = vrot.slane %v761, %v765
      %v767 = vadd.f32 %v749, %v766
      %v768 = vadd.f32 %v756, %v766
      %v769 = vmax.f32 %v767, 0.0
      %v770 = vmax.f32 %v768, 0.0
      %v773 = vcombine.low %v769, %v770
      %v775 = vunpack.c.l.s4 1966171168
      %v776 = vunpack.c.0.s8 %v775
      %v777 = vlaneseq
      %v778 = vshrl.u32 %v777, 7
      %v779 = vsub.s32 %v776, %v778
      %v780 = vrot.slane %v773, %v779
      %v782 = vunpack.c.l.s4 1966171168
      %v783 = vunpack.c.0.s8 %v782
      %v784 = vlaneseq
      %v785 = vshrl.u32 %v784, 7
      %v786 = vsub.s32 %v783, %v785
      %v787 = vrot.slane %v780, %v786
      %v789 = vlaneseq
      %vm790 = vcmp.ge.s32.totalorder %v789, 0
      %vm791 = vcmp.lt.s32.totalorder %v789, 256
      %vm792 = vmand %vm790, %vm791
      %793 = vst.msk [vmem:[%s334] sm:$0x3] %vm792, %v787
      %s794 = smul.u32 2, %s22
      %p795 = scmp.lt.s32.totalorder %s794, 3
      %s796 = scalar_select %p795, %s794, 3
      %s797 = scalar_lea.vmem %s9, %s796
      // Predicated region
      $region57: #{regression_block_forward.1} parent=55 // pred_check
        %p798 = pneg %p234
      $region58: #{regression_block_forward.1} parent=55 // pred_check_branch
        %800 = sbr.rel (%p798) target = $region60
      $region59: #{regression_block_forward.1} parent=55 // pred_region
        %s801 = smul.u32 2, %s22
      $region60: #{regression_block_forward.1} parent=55 // pred_fallthru
        _
    $region56: #{regression_block_forward.1} parent=5 // pred_fallthru
      _
    %p802 = scmp.le.s32.totalorder 2, %s17
    // Predicated region
    $region61: #{regression_block_forward.1} parent=5 // pred_check
      %p803 = pneg %p802
    $region62: #{regression_block_forward.1} parent=5 // pred_check_branch
      %805 = sbr.rel (%p803) target = $region64
    $region63: #{regression_block_forward.1} parent=5 // pred_region
      %s806 = ssub.s32 %s17, 2
      // Predicated region
      $region65: #{regression_block_forward.1} parent=63 // pred_check
        %p807 = pneg %p240
      $region66: #{regression_block_forward.1} parent=63 // pred_check_branch
        %809 = sbr.rel (%p807) target = $region68
      $region67: #{regression_block_forward.1} parent=63 // pred_region
        %s810 = smul.u32 2, %s23
        %p811 = scmp.lt.s32.totalorder %s810, 3
        %s812 = scalar_select %p811, %s810, 3
        %s813 = scalar_lea.vmem %s9, %s812
      $region68: #{regression_block_forward.1} parent=63 // pred_fallthru
        _
    $region64: #{regression_block_forward.1} parent=5 // pred_fallthru
      _
  $region6: #{regression_block_forward.1} parent=0 // loop_footer
    %s21 = sadd.s32 1, %s17
  $region7: #{regression_block_forward.1} parent=0 // loop_footer_branch
    %16 = sbr.rel target = $region3
  $region8: #{regression_block_forward.1} parent=0 // loop_exit
    _

</llo_original>
